<compile_context>
chip_gen: v7x
topology: tpu7x:2x2x1
jax: 0.10.0
libtpu: 0.0.40
codegen_flags: <defaults>
</compile_context>

<pallas_src>
import jax
import jax.numpy as jnp
from jax.experimental import pallas as pl
from jax.experimental.pallas import tpu as pltpu


def _round_up(a: int, m: int) -> int:
    return ((a + m - 1) // m) * m


def _discriminator_kernel(x_ref, w_ref, b_ref, o_ref):
    # x_ref: (TB, F) VMEM tile (native dtype), w_ref: (1, F) f32 VMEM (resident),
    # b_ref: (1, 1) f32 SMEM, o_ref: (TB, 1).
    x = x_ref[...].astype(jnp.float32)               # upcast hidden under DMA
    w = w_ref[...]                                    # (1, F) f32
    # VPU elementwise multiply + XLU lane reduce -> (TB, 1) f32 accumulator.
    acc = jnp.sum(x * w, axis=-1, keepdims=True)
    o_ref[...] = (acc + b_ref[0, 0]).astype(o_ref.dtype)


def discriminator_forward(x, w_row, b, *, block_b: int = 4096):
    """Compute x @ w_row.T + b with a batch-tiled Pallas kernel.

    x     : (B, F) float32 or bfloat16 (streamed in native dtype)
    w_row : (1, F) float32   (the PyTorch nn.Linear weight, unchanged layout)
    b     : (1, 1) float32   (bias, lives in SMEM)
    returns (B, 1) in x.dtype
    """
    B, F = x.shape
    itemsize = jnp.dtype(x.dtype).itemsize

    # Batch tile: multiple of 8 sublanes.  Prefer >=2 grid steps so the
    # "parallel" axis actually lands work on both TensorCores on v7x.
    tb = max(8, min(block_b, _round_up(pl.cdiv(B, 2), 8)))

    # Keep the double-buffered x tile within ~20 MB so we stay comfortably
    # inside scoped VMEM on every generation (v5e 16 MiB default is raised
    # below; v7x physical VMEM is 64 MiB/TC).
    max_tile_bytes = 20 << 20
    while tb > 8 and 2 * tb * F * itemsize > max_tile_bytes:
        tb = max(8, _round_up(tb // 2, 8))

    grid = (pl.cdiv(B, tb),)   # ragged last block is clipped; no jnp.pad pass

    # Raise the scoped-VMEM limit with headroom for the chosen tile.
    vmem_needed = 2 * tb * F * itemsize + 2 * tb * 4 + F * 4 + (4 << 20)
    vmem_limit = int(min(max(vmem_needed, 24 << 20), 48 << 20))

    out = pl.pallas_call(
        _discriminator_kernel,
        out_shape=jax.ShapeDtypeStruct((B, 1), x.dtype),
        grid_spec=pltpu.PrefetchScalarGridSpec(
            num_scalar_prefetch=0,
            grid=grid,
            in_specs=[
                # x: streamed batch tiles, double-buffered by the pipeline.
                pl.BlockSpec((tb, F), lambda i: (i, 0)),
                # weight row: constant index_map -> resident across all steps.
                pl.BlockSpec((1, F), lambda i: (0, 0)),
                # bias scalar: whole array in SMEM, read on the scalar path.
                pl.BlockSpec(memory_space=pltpu.MemorySpace.SMEM),
            ],
            out_specs=pl.BlockSpec((tb, 1), lambda i: (i, 0)),
        ),
        compiler_params=pltpu.CompilerParams(
            # Batch tiles are independent -> parallel (sharded across the two
            # TensorCores on v7x; harmless on v5e/v6e).
            dimension_semantics=("parallel",),
            vmem_limit_bytes=vmem_limit,
        ),
    )(x, w_row.astype(jnp.float32), b)

    return out


def init_discriminators_params(key, att_size):
    """Deterministic init matching weights_init:
    Linear weights ~ N(0, 0.02), biases = 0.
    discriminatorU is also initialized (unused in forward), for parity.
    """
    kS, kU = jax.random.split(key, 2)
    params = {
        "discriminatorS": {
            "weight": 0.02 * jax.random.normal(kS, (1, att_size), jnp.float32),
            "bias": jnp.zeros((1,), jnp.float32),
        },
        "discriminatorU": {
            "weight": 0.02 * jax.random.normal(kU, (1, att_size), jnp.float32),
            "bias": jnp.zeros((1,), jnp.float32),
        },
    }
    return params


def discriminators_apply(params, x, *, block_b: int = 4096):
    # forward(x) = discriminatorS(x).  x is passed in its native dtype; the
    # kernel upcasts to f32 internally for the accumulate.
    w = params["discriminatorS"]["weight"]          # (1, F) — kept as a row
    b = params["discriminatorS"]["bias"]            # (1,)
    b2 = b.reshape(1, 1).astype(jnp.float32)        # (1, 1) scalar for SMEM
    return discriminator_forward(x, w, b2, block_b=block_b)


if __name__ == "__main__":
    key = jax.random.PRNGKey(0)
    k_param, k_x = jax.random.split(key)

    batch = 20
    att_size = 32  # small stand-in for opt.attSize (=312 in the original config)

    params = init_discriminators_params(k_param, att_size)
    x = jax.random.normal(k_x, (batch, att_size), jnp.float32)

    # Reference in plain JAX.
    ref = x @ params["discriminatorS"]["weight"].T + params["discriminatorS"]["bias"]

    # Default path: tile picked so the grid has 2 steps (tb=16 here).
    out = discriminators_apply(params, x)
    out = jax.block_until_ready(out)
    assert out.shape == (batch, 1)
    assert jnp.allclose(out, ref, atol=1e-5, rtol=1e-5)

    # Small-tile path: block_b=8 -> grid of 3 with a ragged (clipped) last block.
    out_tiled = discriminators_apply(params, x, block_b=8)
    out_tiled = jax.block_until_ready(out_tiled)
    assert jnp.allclose(out_tiled, ref, atol=1e-5, rtol=1e-5)

    # Native bf16 activations: streamed as bf16, upcast inside the kernel.
    x_bf16 = x.astype(jnp.bfloat16)
    out_bf16 = jax.block_until_ready(discriminators_apply(params, x_bf16))
    ref_bf16 = (x_bf16.astype(jnp.float32)
                @ params["discriminatorS"]["weight"].T
                + params["discriminatorS"]["bias"])
    assert out_bf16.dtype == jnp.bfloat16
    assert jnp.allclose(out_bf16.astype(jnp.float32), ref_bf16, atol=2e-2, rtol=2e-2)

    print("KERNEL_OK")
</pallas_src>

<mosaic_0001>
module attributes {stable_mosaic.version = 11 : i64} {
  func.func @_discriminator_kernel(%arg0: i32, %arg1: memref<16x32xf32, #tpu.memory_space<vmem>>, %arg2: memref<1x32xf32, #tpu.memory_space<vmem>>, %arg3: memref<1x1xf32, #tpu.memory_space<smem>>, %arg4: memref<16x1xf32, #tpu.memory_space<vmem>>) attributes {dimension_semantics = [#tpu.dimension_semantics<parallel>], iteration_bounds = array<i64: 2>, scalar_prefetch = 0 : i64, scratch_operands = 0 : i64, tpu.core_type = #tpu.core_type<tc>, window_params = [{transform_indices = @transform_0, window_bounds = array<i64: 16, 32>}, {pipeline_mode = #tpu.pipeline_mode<synchronous>, transform_indices = @transform_1, window_bounds = array<i64: 1, 32>}, {transform_indices = @transform_2, window_bounds = array<i64: 1, 1>}, {transform_indices = @transform_3, window_bounds = array<i64: 16, 1>}]} {
    %c0 = arith.constant 0 : index
    %c0_0 = arith.constant 0 : index
    %0 = vector.load %arg1[%c0, %c0_0] : memref<16x32xf32, #tpu.memory_space<vmem>>, vector<16x32xf32>
    %c0_1 = arith.constant 0 : index
    %c0_2 = arith.constant 0 : index
    %1 = vector.load %arg2[%c0_1, %c0_2] : memref<1x32xf32, #tpu.memory_space<vmem>>, vector<1x32xf32>
    %2 = vector.broadcast %1 : vector<1x32xf32> to vector<16x32xf32>
    %3 = arith.mulf %0, %2 : vector<16x32xf32>
    %cst = arith.constant dense<0.000000e+00> : vector<16xf32>
    %4 = vector.multi_reduction <add>, %3, %cst [1] : vector<16x32xf32> to vector<16xf32>
    %5 = vector.shape_cast %4 : vector<16xf32> to vector<16x1xf32>
    %c0_3 = arith.constant 0 : index
    %c0_4 = arith.constant 0 : index
    %6 = memref.load %arg3[%c0_3, %c0_4] : memref<1x1xf32, #tpu.memory_space<smem>>
    %7 = vector.broadcast %6 : f32 to vector<16x1xf32>
    %8 = arith.addf %5, %7 : vector<16x1xf32>
    %c0_5 = arith.constant 0 : index
    %c0_6 = arith.constant 0 : index
    %9 = vector.load %arg4[%c0_5, %c0_6] : memref<16x1xf32, #tpu.memory_space<vmem>>, vector<16x1xf32>
    tpu.vector_store %arg4[%c0_5, %c0_6], %8 {strides = array<i32>} : memref<16x1xf32, #tpu.memory_space<vmem>>, vector<16x1xf32>,
    return
  }
  func.func @transform_0(%arg0: i32) -> (i32, i32) {
    %c0_i32 = arith.constant 0 : i32
    %c0_i32_0 = arith.constant 0 : i32
    return %arg0, %c0_i32 : i32, i32
  }
  func.func @transform_1(%arg0: i32) -> (i32, i32) {
    %c0_i32 = arith.constant 0 : i32
    %c0_i32_0 = arith.constant 0 : i32
    %c0_i32_1 = arith.constant 0 : i32
    return %c0_i32, %c0_i32_0 : i32, i32
  }
  func.func @transform_2(%arg0: i32) -> (i32, i32) {
    %c0_i32 = arith.constant 0 : i32
    %c0_i32_0 = arith.constant 0 : i32
    %c0_i32_1 = arith.constant 0 : i32
    return %c0_i32, %c0_i32_0 : i32, i32
  }
  func.func @transform_3(%arg0: i32) -> (i32, i32) {
    %c0_i32 = arith.constant 0 : i32
    %c0_i32_0 = arith.constant 0 : i32
    return %arg0, %c0_i32 : i32, i32
  }
}

</mosaic_0001>

<llo_original>
// kernel: tpu_custom_call.1
$region0: #{tpu_custom_call.1}
  #allocation0 [shape = 'u32[]', space=smem, size = 0x4, offset = 0x4, fixed_abs, tag = 'smem constant byte address 0x4 - core index']
  #allocation1 [shape = 'u32[144,128]{1,0:T(1,128)}', space=vmem, size = 0x12000, scoped, tag = 'internal scratch']
  #allocation2 [shape = 'f32[1,1]{1,0:T(1,128)S(6)}', space=smem, size = 0x200, scoped, tag = 'scoped memory for tpu_custom_call.1']
  %s0 = inlined_call_operand.hbm [shape: f32[20,32], index: 0, kind: input, shape index: {}]
  %s1 = inlined_call_operand.vmem [shape: f32[1,32], index: 1, kind: input, shape index: {}]
  %s2 = inlined_call_operand.<no memory space> [shape: f32[1,1], index: 2, kind: input, shape index: {}]
  %s3 = inlined_call_operand.vmem [shape: f32[20,1], index: 3, kind: output, shape index: {}]
  %s4 = sld [smem:[#allocation0]]
  $region97: #{tpu_custom_call.1} parent=0
    _
  %s6 = ssub.s32 1, %s4
  %s7 = scalar_select 0, %s6, %s4
  %8 = sst [smem:[#allocation2]] %s2
  $region1: #{tpu_custom_call.1} parent=0
    #allocation3 [shape = 'u8[16384]{0}', space=vmem, size = 0x4000, scoped, tag = 'input window, operand 0']
    #allocation4 [shape = 's32[2]{0}', space=sflag, size = 0x8, scoped, tag = 'scoped memory for tpu_custom_call.1']
    #allocation5 [shape = 'u8[16384]{0}', space=vmem, size = 0x4000, scoped, tag = 'output window, operand 0']
    %9 = vsyncpa [#allocation4], 0
    %s10 = scalar_lea.sflag [#allocation4], 1
    %11 = vsyncpa %s10, 0
    loop: start=0, step=1, limit=4
    $region2: #{tpu_custom_call.1} parent=1 // loop_pre_header
      _
    $region3: #{tpu_custom_call.1} parent=1 // loop_header
      %s13 = sphi 0, %s17
      %p14 = scmp.ge.s32.totalorder %s13, 4
      %s23 = sphi 0, %s25
      %s26 = sphi 0, %s23
      %s27 = sphi 0, %s26
      %s43 = sphi 0, %s27
      %s47 = sphi 0, %s47
      %s49 = sphi 0, %s47
      %s50 = sphi 0, %s49
      %s64 = sphi 0, %s50
      %s68 = sphi 0, %s68
      %s70 = sphi 0, %s68
      %s71 = sphi 0, %s70
      %s85 = sphi 0, %s71
      %s91 = sphi 0, %s93
      %s94 = sphi 0, %s91
      %s95 = sphi 0, %s94
      %s111 = sphi 0, %s95
    $region4: #{tpu_custom_call.1} parent=1 // loop_header_branch
      %16 = sbr.rel (%p14) target = $region8
    $region5: #{tpu_custom_call.1} parent=1 // loop_body
      %s18 = ssub.s32 %s13, 1
      %s19 = ssub.s32 %s13, 2
      %s20 = sadd.s32 %s13, 1
      %s21 = ssub.s32 %s13, %s20
      %p22 = scmp.eq.s32.totalorder %s21, 0
      %s24 = sadd.s32 %s23, 1
      %s25 = scalar_select %p22, %s23, %s24
      %p28 = pneg %p22
      %p29 = scmp.eq.s32.totalorder %s13, 1
      %p30 = por %p28, %p29
      %p31 = scmp.ne.s32.totalorder %s23, %s26
      %p32 = scmp.eq.s32.totalorder %s13, 0
      %p33 = por %p31, %p32
      %p34 = scmp.ne.s32.totalorder %s23, %s26
      %p35 = scmp.eq.s32.totalorder %s18, 1
      %p36 = por %p34, %p35
      %p37 = scmp.ne.s32.totalorder %s26, %s27
      %p38 = scmp.eq.s32.totalorder %s18, 0
      %p39 = por %p37, %p38
      %p40 = scmp.ne.s32.totalorder %s26, %s27
      %p41 = scmp.eq.s32.totalorder %s19, 1
      %p42 = por %p40, %p41
      %p44 = scmp.ne.s32.totalorder %s27, %s43
      %p45 = scmp.eq.s32.totalorder %s19, 0
      %p46 = por %p44, %p45
      %s48 = sadd.s32 %s47, 1
      %p51 = scmp.eq.s32.totalorder %s13, 1
      %p52 = scmp.ne.s32.totalorder %s47, %s49
      %p53 = scmp.eq.s32.totalorder %s13, 0
      %p54 = por %p52, %p53
      %p55 = scmp.ne.s32.totalorder %s47, %s49
      %p56 = scmp.eq.s32.totalorder %s18, 1
      %p57 = por %p55, %p56
      %p58 = scmp.ne.s32.totalorder %s49, %s50
      %p59 = scmp.eq.s32.totalorder %s18, 0
      %p60 = por %p58, %p59
      %p61 = scmp.ne.s32.totalorder %s49, %s50
      %p62 = scmp.eq.s32.totalorder %s19, 1
      %p63 = por %p61, %p62
      %p65 = scmp.ne.s32.totalorder %s50, %s64
      %p66 = scmp.eq.s32.totalorder %s19, 0
      %p67 = por %p65, %p66
      %s69 = sadd.s32 %s68, 1
      %p72 = scmp.eq.s32.totalorder %s13, 1
      %p73 = scmp.ne.s32.totalorder %s68, %s70
      %p74 = scmp.eq.s32.totalorder %s13, 0
      %p75 = por %p73, %p74
      %p76 = scmp.ne.s32.totalorder %s68, %s70
      %p77 = scmp.eq.s32.totalorder %s18, 1
      %p78 = por %p76, %p77
      %p79 = scmp.ne.s32.totalorder %s70, %s71
      %p80 = scmp.eq.s32.totalorder %s18, 0
      %p81 = por %p79, %p80
      %p82 = scmp.ne.s32.totalorder %s70, %s71
      %p83 = scmp.eq.s32.totalorder %s19, 1
      %p84 = por %p82, %p83
      %p86 = scmp.ne.s32.totalorder %s71, %s85
      %p87 = scmp.eq.s32.totalorder %s19, 0
      %p88 = por %p86, %p87
      %s89 = ssub.s32 %s13, %s20
      %p90 = scmp.eq.s32.totalorder %s89, 0
      %s92 = sadd.s32 %s91, 1
      %s93 = scalar_select %p90, %s91, %s92
      %p96 = pneg %p90
      %p97 = scmp.eq.s32.totalorder %s13, 1
      %p98 = por %p96, %p97
      %p99 = scmp.ne.s32.totalorder %s91, %s94
      %p100 = scmp.eq.s32.totalorder %s13, 0
      %p101 = por %p99, %p100
      %p102 = scmp.ne.s32.totalorder %s91, %s94
      %p103 = scmp.eq.s32.totalorder %s18, 1
      %p104 = por %p102, %p103
      %p105 = scmp.ne.s32.totalorder %s94, %s95
      %p106 = scmp.eq.s32.totalorder %s18, 0
      %p107 = por %p105, %p106
      %p108 = scmp.ne.s32.totalorder %s94, %s95
      %p109 = scmp.eq.s32.totalorder %s19, 1
      %p110 = por %p108, %p109
      %p112 = scmp.ne.s32.totalorder %s95, %s111
      %p113 = scmp.eq.s32.totalorder %s19, 0
      %p114 = por %p112, %p113
      %p115 = scmp.le.s32.totalorder 1, %s13
      %p116 = scmp.lt.s32.totalorder %s13, 3
      %p117 = pnand %p115, %p116
      %p118 = pneg %p117
      // Predicated region
      $region9: #{tpu_custom_call.1} parent=5 // pred_check
        _
      $region10: #{tpu_custom_call.1} parent=5 // pred_check_branch
        %120 = sbr.rel (%p117) target = $region12
      $region11: #{tpu_custom_call.1} parent=5 // pred_region
        %s121 = ssub.s32 %s13, 1
        // Predicated region
        $region13: #{tpu_custom_call.1} parent=11 // pred_check
          %p122 = pneg %p60
        $region14: #{tpu_custom_call.1} parent=11 // pred_check_branch
          %124 = sbr.rel (%p122) target = $region16
        $region15: #{tpu_custom_call.1} parent=11 // pred_region
          _
        $region16: #{tpu_custom_call.1} parent=11 // pred_fallthru
          _
        // Predicated region
        $region17: #{tpu_custom_call.1} parent=11 // pred_check
          %p125 = pneg %p81
        $region18: #{tpu_custom_call.1} parent=11 // pred_check_branch
          %127 = sbr.rel (%p125) target = $region20
        $region19: #{tpu_custom_call.1} parent=11 // pred_region
          _
        $region20: #{tpu_custom_call.1} parent=11 // pred_fallthru
          _
      $region12: #{tpu_custom_call.1} parent=5 // pred_fallthru
        _
      %p128 = scmp.lt.s32.totalorder %s13, 2
      // Predicated region
      $region21: #{tpu_custom_call.1} parent=5 // pred_check
        %p129 = pneg %p128
      $region22: #{tpu_custom_call.1} parent=5 // pred_check_branch
        %131 = sbr.rel (%p129) target = $region24
      $region23: #{tpu_custom_call.1} parent=5 // pred_region
        // Predicated region
        $region25: #{tpu_custom_call.1} parent=23 // pred_check
          %p132 = pneg %p33
        $region26: #{tpu_custom_call.1} parent=23 // pred_check_branch
          %134 = sbr.rel (%p132) target = $region28
        $region27: #{tpu_custom_call.1} parent=23 // pred_region
          %s135 = sand.u32 %s23, 1
          %s136 = scalar_lea.sflag [#allocation4], %s135
          %s137 = sand.u32 %s23, 1
          %s138 = smul.addr %s137, 16
          %s139 = scalar_lea.vmem [#allocation3], %s138
          %s140 = smul.u32 2, %s13
          %s141 = ssub.s32 3, %s140
          %p142 = scmp.lt.s32.totalorder %s141, 2
          %s143 = scalar_select %p142, %s141, 2
          %s144 = smul.u32 128, %s143
          %s146 = ssub.s32 256, %s144
          %147 = vsyncadd %s136, %s146
          %p148 = scmp.ne.s32.totalorder 0, %s144
          %s149 = smul.addr %s140, 128
          %s150 = scalar_lea.hbm %s0, %s149
          %s151 = smul.u32 8, %s143
          %s152 = sshll.u32 %s139, 4
          %s153 = int_to_ptr.vmem [resolvable:$true] %s152
          %s154 = sshll.u32 %s151, 4
          %158 = dma.hbm_to_vmem [thread:$0]  (%p148), %s150, %s154, %s153, %s136, 128, 128, 8
        $region28: #{tpu_custom_call.1} parent=23 // pred_fallthru
          _
      $region24: #{tpu_custom_call.1} parent=5 // pred_fallthru
        _
      %p159 = scmp.le.s32.totalorder 1, %s13
      %p160 = scmp.lt.s32.totalorder %s13, 3
      %p161 = pnand %p159, %p160
      %p162 = pneg %p161
      // Predicated region
      $region29: #{tpu_custom_call.1} parent=5 // pred_check
        _
      $region30: #{tpu_custom_call.1} parent=5 // pred_check_branch
        %164 = sbr.rel (%p161) target = $region32
      $region31: #{tpu_custom_call.1} parent=5 // pred_region
        %s165 = ssub.s32 %s13, 1
        %s166 = sand.u32 %s26, 1
        %s167 = scalar_lea.sflag [#allocation4], %s166
        %s168 = sand.u32 %s26, 1
        %s169 = smul.addr %s168, 16
        %s170 = scalar_lea.vmem [#allocation3], %s169
        // Predicated region
        $region33: #{tpu_custom_call.1} parent=31 // pred_check
          %p171 = pneg %p39
        $region34: #{tpu_custom_call.1} parent=31 // pred_check_branch
          %173 = sbr.rel (%p171) target = $region36
        $region35: #{tpu_custom_call.1} parent=31 // pred_region
          %174 = dma.done %s167, 256
        $region36: #{tpu_custom_call.1} parent=31 // pred_fallthru
          _
        %s175 = sand.u32 %s26, 1
        %s176 = scalar_lea.sflag [#allocation4], %s175
        %s177 = sand.u32 %s26, 1
        %s178 = smul.addr %s177, 16
        %s179 = scalar_lea.vmem [#allocation3], %s178
        %p180 = pneg %p39
        %p181 = pneg %p36
        %p182 = pneg %p60
        %p183 = pneg %p57
        %p184 = pneg %p81
        %p185 = pneg %p78
        %p186 = pneg %p107
        %p187 = pneg %p104
        %s188 = sand.u32 %s94, 1
        %s189 = sand.u32 %s94, 1
        %s190 = smul.addr %s189, 16
        %s191 = scalar_lea.vmem [#allocation5], %s190
        %s192 = smul.u32 2, %s18
        %s193 = ssub.s32 3, %s192
        %p194 = scmp.lt.s32.totalorder %s193, 2
        %s195 = scalar_select %p194, %s193, 2
        %s196 = smul.u32 128, %s195
        %s197 = smul.u32 2, %s18
        %s198 = ssub.s32 3, %s197
        %p199 = scmp.lt.s32.totalorder %s198, 2
        %s200 = scalar_select %p199, %s198, 2
        %s201 = smul.u32 128, %s200
        %v202 = vld [vmem:[%s170] sm:$0xff]
        %v203 = vld [vmem:[%s170 + $0x8] sm:$0xff]
        %v204 = vld [vmem:[%s1] sm:$0x1]
        %v206 = vlaneseq
        %v207 = vshrl.u32 %v206, 7
        %v208 = vsub.s32 0, %v207
        %v209 = vrot.slane %v204, %v208
        %v211 = vmul.f32 %v202, %v209
        %v212 = vmul.f32 %v203, %v209
        %vm213 = vcmask 261120
        %v214 = vsel %vm213, %v211, 0.0
        %215 = vadd.xlane.f32.xlu0 %v214
        %v216 = vpop.xlane.xlu0 %215
        %v217 = vsel %vm213, %v212, 0.0
        %218 = vadd.xlane.f32.xlu0 %v217
        %v219 = vpop.xlane.xlu0 %218
        %s220 = sld [smem:[#allocation2]]
        %v221 = vstv %s220
        %v222 = vadd.f32 %v216, %v221
        %v223 = vadd.f32 %v219, %v221
        %vm224 = vcmask 7168
        %225 = vst.msk [vmem:[%s191] sm:$0xff] %vm224, %v222
        %226 = vst.msk [vmem:[%s191 + $0x8] sm:$0xff] %vm224, %v223
        %s227 = sand.u32 %s94, 1
        %s228 = sand.u32 %s94, 1
        %s229 = smul.addr %s228, 16
        %s230 = scalar_lea.vmem [#allocation5], %s229
        // Predicated region
        $region37: #{tpu_custom_call.1} parent=31 // pred_check
          %p231 = pneg %p104
        $region38: #{tpu_custom_call.1} parent=31 // pred_check_branch
          %233 = sbr.rel (%p231) target = $region40
        $region39: #{tpu_custom_call.1} parent=31 // pred_region
          %s234 = smul.u32 2, %s18
          %s235 = ssub.s32 3, %s234
          %p236 = scmp.lt.s32.totalorder %s235, 2
          %s237 = scalar_select %p236, %s235, 2
          %s238 = smul.u32 128, %s237
          %p239 = scmp.ne.s32.totalorder 0, %s238
          %s240 = smul.addr %s234, 8
          %s241 = scalar_lea.vmem %s3, %s240
          // Predicated region
          $region41: #{tpu_custom_call.1} parent=39 // pred_check
            %p242 = pneg %p239
          $region42: #{tpu_custom_call.1} parent=39 // pred_check_branch
            %244 = sbr.rel (%p242) target = $region44
          $region43: #{tpu_custom_call.1} parent=39 // pred_region
            // Predicated region
            $region45: #{tpu_custom_call.1} parent=43 // pred_check
              _
            $region46: #{tpu_custom_call.1} parent=43 // pred_check_branch
              %246 = sbr.rel (0) target = $region48
            $region47: #{tpu_custom_call.1} parent=43 // pred_region
              // Predicated region
              $region67: #{tpu_custom_call.1} parent=47 // pred_check
                _
              $region68: #{tpu_custom_call.1} parent=47 // pred_check_branch
                %297 = sbr.rel (0) target = $region70
              $region69: #{tpu_custom_call.1} parent=47 // pred_region
                %s298 = sshrl.u32 %s237, 1
                // While loop
                $region71: #{tpu_custom_call.1} parent=69 // loop_pre_header
                  _
                $region72: #{tpu_custom_call.1} parent=69 // loop_header
                  %s300 = sphi 0, %s302
                  %p301 = scmp.ge.s32.totalorder %s300, %s298
                  %s305 = sphi 0, %s314
                  %s306 = sphi %s230, %s317
                  %s307 = sphi %s241, %s318
                $region73: #{tpu_custom_call.1} parent=69 // loop_header_branch
                  %304 = sbr.rel (%p301) target = $region77
                $region74: #{tpu_custom_call.1} parent=69 // loop_body
                  %v308 = vld [vmem:[%s306] sm:$0xff]
                  %309 = vst [vmem:[%s307] sm:$0xff] %v308
                  %v310 = vld [vmem:[%s306 + $0x8] sm:$0xff]
                  %311 = vst [vmem:[%s307 + $0x8] sm:$0xff] %v310
                  %s312 = sadd.s32 1, %s305
                  %p313 = scmp.ge.s32.totalorder %s312, %s298
                  %s314 = scalar_select %p313, 0, %s312
                  %s315 = smul.u32 %s314, 16
                  %s316 = smul.u32 %s314, 16
                  %s317 = scalar_lea.vmem %s230, %s315 [#allocation5]
                  %s318 = scalar_lea.vmem %s241, %s316
                $region75: #{tpu_custom_call.1} parent=69 // loop_footer
                  %s302 = sadd.s32 %s300, 1
                $region76: #{tpu_custom_call.1} parent=69 // loop_footer_branch
                  %299 = sbr.rel target = $region72
                $region77: #{tpu_custom_call.1} parent=69 // loop_exit
                  _
                %s319 = sshrl.u32 %s237, 1
                %s320 = sand.u32 %s237, 1
                %s321 = smul.u32 %s319, 2
                %s322 = smul.u32 8, %s321
                %s323 = scalar_lea.vmem %s230, %s322 [#allocation5]
                %s324 = smul.u32 8, %s321
                %s325 = scalar_lea.vmem %s241, %s324
                // While loop
                $region78: #{tpu_custom_call.1} parent=69 // loop_pre_header
                  _
                $region79: #{tpu_custom_call.1} parent=69 // loop_header
                  %s327 = sphi 0, %s329
                  %p328 = scmp.ge.s32.totalorder %s327, %s320
                  %s332 = sphi 0, %s339
                  %s333 = sphi %s323, %s342
                  %s334 = sphi %s325, %s343
                $region80: #{tpu_custom_call.1} parent=69 // loop_header_branch
                  %331 = sbr.rel (%p328) target = $region84
                $region81: #{tpu_custom_call.1} parent=69 // loop_body
                  %v335 = vld [vmem:[%s333] sm:$0xff]
                  %336 = vst [vmem:[%s334] sm:$0xff] %v335
                  %s337 = sadd.s32 1, %s332
                  %p338 = scmp.ge.s32.totalorder %s337, %s320
                  %s339 = scalar_select %p338, 0, %s337
                  %s340 = smul.u32 %s339, 8
                  %s341 = smul.u32 %s339, 8
                  %s342 = scalar_lea.vmem %s323, %s340 [#allocation5]
                  %s343 = scalar_lea.vmem %s325, %s341
                $region82: #{tpu_custom_call.1} parent=69 // loop_footer
                  %s329 = sadd.s32 %s327, 1
                $region83: #{tpu_custom_call.1} parent=69 // loop_footer_branch
                  %326 = sbr.rel target = $region79
                $region84: #{tpu_custom_call.1} parent=69 // loop_exit
                  _
              $region70: #{tpu_custom_call.1} parent=47 // pred_fallthru
                _
              // Predicated region
              $region85: #{tpu_custom_call.1} parent=47 // pred_check
                _
              $region86: #{tpu_custom_call.1} parent=47 // pred_check_branch
                %345 = sbr.rel target = $region88
              $region87: #{tpu_custom_call.1} parent=47 // pred_region
                _
              $region88: #{tpu_custom_call.1} parent=47 // pred_fallthru
                _
            $region48: #{tpu_custom_call.1} parent=43 // pred_fallthru
              _
            // Predicated region
            $region49: #{tpu_custom_call.1} parent=43 // pred_check
              _
            $region50: #{tpu_custom_call.1} parent=43 // pred_check_branch
              %248 = sbr.rel target = $region52
            $region51: #{tpu_custom_call.1} parent=43 // pred_region
              %s250 = sshrl.u32 %s237, 1
              // While loop
              $region53: #{tpu_custom_call.1} parent=51 // loop_pre_header
                _
              $region54: #{tpu_custom_call.1} parent=51 // loop_header
                %s252 = sphi 0, %s254
                %p253 = scmp.ge.s32.totalorder %s252, %s250
                %s257 = sphi 0, %s266
                %s258 = sphi %s230, %s269
                %s259 = sphi %s241, %s270
              $region55: #{tpu_custom_call.1} parent=51 // loop_header_branch
                %256 = sbr.rel (%p253) target = $region59
              $region56: #{tpu_custom_call.1} parent=51 // loop_body
                %v260 = vld [vmem:[%s258] sm:$0xff]
                %261 = vst [vmem:[%s259] sm:$0xff] %v260
                %v262 = vld [vmem:[%s258 + $0x8] sm:$0xff]
                %263 = vst [vmem:[%s259 + $0x8] sm:$0xff] %v262
                %s264 = sadd.s32 1, %s257
                %p265 = scmp.ge.s32.totalorder %s264, %s250
                %s266 = scalar_select %p265, 0, %s264
                %s267 = smul.u32 %s266, 16
                %s268 = smul.u32 %s266, 16
                %s269 = scalar_lea.vmem %s230, %s267 [#allocation5]
                %s270 = scalar_lea.vmem %s241, %s268
              $region57: #{tpu_custom_call.1} parent=51 // loop_footer
                %s254 = sadd.s32 %s252, 1
              $region58: #{tpu_custom_call.1} parent=51 // loop_footer_branch
                %251 = sbr.rel target = $region54
              $region59: #{tpu_custom_call.1} parent=51 // loop_exit
                _
              %s271 = sshrl.u32 %s237, 1
              %s272 = sand.u32 %s237, 1
              %s273 = smul.u32 %s271, 2
              %s274 = smul.u32 8, %s273
              %s275 = scalar_lea.vmem %s230, %s274 [#allocation5]
              %s276 = smul.u32 8, %s273
              %s277 = scalar_lea.vmem %s241, %s276
              // While loop
              $region60: #{tpu_custom_call.1} parent=51 // loop_pre_header
                _
              $region61: #{tpu_custom_call.1} parent=51 // loop_header
                %s279 = sphi 0, %s281
                %p280 = scmp.ge.s32.totalorder %s279, %s272
                %s284 = sphi 0, %s291
                %s285 = sphi %s275, %s294
                %s286 = sphi %s277, %s295
              $region62: #{tpu_custom_call.1} parent=51 // loop_header_branch
                %283 = sbr.rel (%p280) target = $region66
              $region63: #{tpu_custom_call.1} parent=51 // loop_body
                %v287 = vld [vmem:[%s285] sm:$0xff]
                %288 = vst [vmem:[%s286] sm:$0xff] %v287
                %s289 = sadd.s32 1, %s284
                %p290 = scmp.ge.s32.totalorder %s289, %s272
                %s291 = scalar_select %p290, 0, %s289
                %s292 = smul.u32 %s291, 8
                %s293 = smul.u32 %s291, 8
                %s294 = scalar_lea.vmem %s275, %s292 [#allocation5]
                %s295 = scalar_lea.vmem %s277, %s293
              $region64: #{tpu_custom_call.1} parent=51 // loop_footer
                %s281 = sadd.s32 %s279, 1
              $region65: #{tpu_custom_call.1} parent=51 // loop_footer_branch
                %278 = sbr.rel target = $region61
              $region66: #{tpu_custom_call.1} parent=51 // loop_exit
                _
            $region52: #{tpu_custom_call.1} parent=43 // pred_fallthru
              _
          $region44: #{tpu_custom_call.1} parent=39 // pred_fallthru
            _
          %346 = vnop
        $region40: #{tpu_custom_call.1} parent=31 // pred_fallthru
          _
      $region32: #{tpu_custom_call.1} parent=5 // pred_fallthru
        _
      %p347 = scmp.le.s32.totalorder 2, %s13
      // Predicated region
      $region89: #{tpu_custom_call.1} parent=5 // pred_check
        %p348 = pneg %p347
      $region90: #{tpu_custom_call.1} parent=5 // pred_check_branch
        %350 = sbr.rel (%p348) target = $region92
      $region91: #{tpu_custom_call.1} parent=5 // pred_region
        %s351 = ssub.s32 %s13, 2
        // Predicated region
        $region93: #{tpu_custom_call.1} parent=91 // pred_check
          %p352 = pneg %p110
        $region94: #{tpu_custom_call.1} parent=91 // pred_check_branch
          %354 = sbr.rel (%p352) target = $region96
        $region95: #{tpu_custom_call.1} parent=91 // pred_region
          %s355 = sand.u32 %s95, 1
          %s356 = sand.u32 %s95, 1
          %s357 = smul.addr %s356, 16
          %s358 = scalar_lea.vmem [#allocation5], %s357
        $region96: #{tpu_custom_call.1} parent=91 // pred_fallthru
          _
      $region92: #{tpu_custom_call.1} parent=5 // pred_fallthru
        _
    $region6: #{tpu_custom_call.1} parent=1 // loop_footer
      %s17 = sadd.s32 1, %s13
    $region7: #{tpu_custom_call.1} parent=1 // loop_footer_branch
      %12 = sbr.rel target = $region3
    $region8: #{tpu_custom_call.1} parent=1 // loop_exit
      _
    %359 = vsyncpa [#allocation4], 1
    %s360 = scalar_lea.sflag [#allocation4], 1
    %361 = vsyncpa %s360, 1

</llo_original>
